<compile_context>
chip_gen: v7x
topology: tpu7x:2x2x1
jax: 0.10.0
libtpu: 0.0.40
codegen_flags: <defaults>
</compile_context>

<pallas_src>
import jax
import jax.numpy as jnp
from jax.experimental import pallas as pl
from jax.experimental.pallas import tpu as pltpu

EMBED_DIM = 32      # enc_u.embed_dim
N_NODES   = 8       # batch of node indices (square criterion matrix)
NUM_U     = 32      # synthetic user-embedding table size
NUM_V     = 32      # synthetic item-embedding table size

NEG_MASK = -1000000.0


def _vmem():
    return pl.BlockSpec(memory_space=pltpu.MemorySpace.VMEM)


def _smem():
    return pl.BlockSpec(memory_space=pltpu.MemorySpace.SMEM)


# ---------------------------------------------------------------------------
# Shared body: in-kernel gather (one-hot MXU matmul) + packed dual encoder.
#   xu = relu(emb_u[nodes_u] @ Wu + bu),  xv = relu(emb_v[nodes_v] @ Wv + bv)
# computed as one (2N, D) @ (D, 2D) MXU pass on packed operands.
# ---------------------------------------------------------------------------
def _gather_and_encode(nodes_u_ref, nodes_v_ref, emb_u_ref, emb_v_ref,
                       w_ref, b_ref):
    n = nodes_u_ref.shape[0]
    d = emb_u_ref.shape[1]

    # one-hot gather: (N,1) int32 vs lane-iota -> (N, NUM) one-hot, then MXU
    oh_u = (nodes_u_ref[...] ==
            jax.lax.broadcasted_iota(jnp.int32, (n, emb_u_ref.shape[0]), 1)
            ).astype(jnp.float32)
    oh_v = (nodes_v_ref[...] ==
            jax.lax.broadcasted_iota(jnp.int32, (n, emb_v_ref.shape[0]), 1)
            ).astype(jnp.float32)
    xu_in = jnp.dot(oh_u, emb_u_ref[...], preferred_element_type=jnp.float32)
    xv_in = jnp.dot(oh_v, emb_v_ref[...], preferred_element_type=jnp.float32)

    # packed encoder: one MXU pass for both Linear layers, one bias/ReLU
    x_pack = jnp.concatenate([xu_in, xv_in], axis=0)                # (2N, D)
    y = jnp.dot(x_pack, w_ref[...],
                preferred_element_type=jnp.float32) + b_ref[...]    # (2N, 2D)
    y = jnp.maximum(y, 0.0)

    xu = y[:n, :d]        # u rows, Wu columns
    xv = y[n:, d:]        # v rows, Wv columns
    return xu, xv


# ---------------------------------------------------------------------------
# Kernel A: forward(nodes_u, nodes_v) -> packed [embeds_u | embeds_v]  (N, 2D)
# ---------------------------------------------------------------------------
def _hgnn_fwd_kernel(nodes_u_ref, nodes_v_ref, emb_u_ref, emb_v_ref,
                     w_ref, b_ref, emb_out_ref):
    xu, xv = _gather_and_encode(nodes_u_ref, nodes_v_ref,
                                emb_u_ref, emb_v_ref, w_ref, b_ref)
    emb_out_ref[...] = jnp.concatenate([xu, xv], axis=1)


# ---------------------------------------------------------------------------
# Kernel B: fully fused loss path (gather + encoders + criterion)
#   netout = x_u @ x_v^T
#   score  = (labels - I) * -1e6 + netout * exp(logit_scale)
#   loss   = 0.5*mean(rowLSE(score) - diag) + 0.5*mean(colLSE(score) - diag)
# (identical to 0.5*NLL(log_softmax(score,-1),arange) +
#               0.5*NLL(log_softmax(score^T,-1),arange))
# ---------------------------------------------------------------------------
def _hgnn_loss_kernel(nodes_u_ref, nodes_v_ref, scale_ref,
                      emb_u_ref, emb_v_ref, w_ref, b_ref, labels_ref,
                      emb_out_ref, netout_ref, loss_ref):
    xu, xv = _gather_and_encode(nodes_u_ref, nodes_v_ref,
                                emb_u_ref, emb_v_ref, w_ref, b_ref)
    emb_out_ref[...] = jnp.concatenate([xu, xv], axis=1)

    n = xu.shape[0]

    # netout = x_u @ x_v^T via dot_general contraction dims (no materialized .T)
    netout = jax.lax.dot_general(xu, xv, (((1,), (1,)), ((), ())),
                                 preferred_element_type=jnp.float32)   # [N, N]
    netout_ref[...] = netout

    # logit scale: one scalar read from SMEM, one EUP exp on a (1,1) value
    scale = jnp.exp(jnp.full((1, 1), scale_ref[0], jnp.float32))

    eye = (jax.lax.broadcasted_iota(jnp.int32, (n, n), 0)
           == jax.lax.broadcasted_iota(jnp.int32, (n, n), 1)).astype(jnp.float32)
    # NOTE: as in the PyTorch reference, this relies on labels having 1.0 on
    # the diagonal so the true pair is never masked.
    score = (labels_ref[...] - eye) * NEG_MASK + netout * scale        # [N, N]

    # diagonal of score (the NLL target entries)
    diag = jnp.sum(score * eye, axis=-1, keepdims=True)                # [N, 1]

    # row-direction LSE (pocket) and column-direction LSE (mol); no transpose,
    # no full log-prob matrices.
    row_max = jnp.max(score, axis=-1, keepdims=True)
    row_lse = row_max + jnp.log(
        jnp.sum(jnp.exp(score - row_max), axis=-1, keepdims=True))     # [N, 1]
    col_max = jnp.max(score, axis=0, keepdims=True)
    col_lse = col_max + jnp.log(
        jnp.sum(jnp.exp(score - col_max), axis=0, keepdims=True))      # [1, N]

    sum_diag = jnp.sum(diag, keepdims=True)                            # (1,1)
    sum_row  = jnp.sum(row_lse, keepdims=True)                         # (1,1)
    sum_col  = jnp.sum(col_lse, keepdims=True)                         # (1,1)

    loss_ref[...] = (0.5 * (sum_row + sum_col) - sum_diag) * (1.0 / n)


# ---------------------------------------------------------------------------
# Cost estimates (let XLA overlap these tiny custom calls with neighbours)
# ---------------------------------------------------------------------------
def _encode_flops():
    return (2 * N_NODES * NUM_U * EMBED_DIM
            + 2 * N_NODES * NUM_V * EMBED_DIM
            + 2 * (2 * N_NODES) * EMBED_DIM * (2 * EMBED_DIM))


def _fwd_cost():
    bytes_in = 4 * (2 * N_NODES + (NUM_U + NUM_V) * EMBED_DIM
                    + EMBED_DIM * 2 * EMBED_DIM + 2 * EMBED_DIM)
    bytes_out = 4 * (N_NODES * 2 * EMBED_DIM)
    return pl.CostEstimate(flops=_encode_flops(), transcendentals=0,
                           bytes_accessed=bytes_in + bytes_out)


def _loss_cost():
    flops = (_encode_flops()
             + 2 * N_NODES * N_NODES * EMBED_DIM       # netout
             + 12 * N_NODES * N_NODES)                 # mask / softmax elementwise
    transcendentals = 2 * N_NODES * N_NODES + 2 * N_NODES + 1
    bytes_in = 4 * (2 * N_NODES + (NUM_U + NUM_V) * EMBED_DIM
                    + EMBED_DIM * 2 * EMBED_DIM + 2 * EMBED_DIM
                    + N_NODES * N_NODES + 1)
    bytes_out = 4 * (N_NODES * 2 * EMBED_DIM + N_NODES * N_NODES + 1)
    return pl.CostEstimate(flops=flops, transcendentals=transcendentals,
                           bytes_accessed=bytes_in + bytes_out)


# ---------------------------------------------------------------------------
# HGNN wrappers
# ---------------------------------------------------------------------------
def init_params(key):
    ks = jax.random.split(key, 6)
    s = 1.0 / jnp.sqrt(EMBED_DIM)
    # Linear weights stored [in, out] and pre-packed [Wu | Wv] at init time, so
    # the per-call wrappers emit zero transpose/reshape/concat HLOs.
    w_u = jax.random.uniform(ks[2], (EMBED_DIM, EMBED_DIM), jnp.float32, -s, s)
    w_v = jax.random.uniform(ks[4], (EMBED_DIM, EMBED_DIM), jnp.float32, -s, s)
    b_u = jax.random.uniform(ks[3], (1, EMBED_DIM), jnp.float32, -s, s)
    b_v = jax.random.uniform(ks[5], (1, EMBED_DIM), jnp.float32, -s, s)
    return {
        "emb_u": jax.random.normal(ks[0], (NUM_U, EMBED_DIM), jnp.float32) * 0.1,
        "emb_v": jax.random.normal(ks[1], (NUM_V, EMBED_DIM), jnp.float32) * 0.1,
        "w_enc": jnp.concatenate([w_u, w_v], axis=1),        # (D, 2D)
        "b_enc": jnp.concatenate([b_u, b_v], axis=1),        # (1, 2D)
        # nn.Parameter(torch.ones([1]) * np.log(14))
        "logit_scale": jnp.full((1,), jnp.log(14.0), jnp.float32),
    }


def _as_node_col(nodes):
    # (N,) or (N,1) -> (N,1) int32; no-op HLO when already in that form.
    return jnp.asarray(nodes, jnp.int32).reshape(N_NODES, 1)


def hgnn_forward(params, nodes_u, nodes_v):
    """forward(nodes_u, nodes_v) -> (embeds_u, embeds_v)."""
    nodes_u = _as_node_col(nodes_u)
    nodes_v = _as_node_col(nodes_v)
    emb_pack = pl.pallas_call(
        _hgnn_fwd_kernel,
        out_shape=jax.ShapeDtypeStruct((N_NODES, 2 * EMBED_DIM), jnp.float32),
        in_specs=[_vmem()] * 6,
        out_specs=_vmem(),
        cost_estimate=_fwd_cost(),
    )(nodes_u, nodes_v, params["emb_u"], params["emb_v"],
      params["w_enc"], params["b_enc"])
    return emb_pack[:, :EMBED_DIM], emb_pack[:, EMBED_DIM:]


def hgnn_loss(params, nodes_u, nodes_v, labels):
    """loss(nodes_u, nodes_v, labels) -> (loss, netout, embeds_u, embeds_v).

    Single fused pallas_call: gather + both encoders + criterion.
    (In a training step use this alone — it already returns the embeddings, so
    do NOT also call hgnn_forward.)
    """
    nodes_u = _as_node_col(nodes_u)
    nodes_v = _as_node_col(nodes_v)
    emb_pack, netout, loss = pl.pallas_call(
        _hgnn_loss_kernel,
        out_shape=(jax.ShapeDtypeStruct((N_NODES, 2 * EMBED_DIM), jnp.float32),
                   jax.ShapeDtypeStruct((N_NODES, N_NODES), jnp.float32),
                   jax.ShapeDtypeStruct((1, 1), jnp.float32)),
        in_specs=[_vmem(), _vmem(), _smem(),
                  _vmem(), _vmem(), _vmem(), _vmem(), _vmem()],
        out_specs=(_vmem(), _vmem(), _vmem()),
        cost_estimate=_loss_cost(),
    )(nodes_u, nodes_v, params["logit_scale"],
      params["emb_u"], params["emb_v"],
      params["w_enc"], params["b_enc"],
      labels.astype(jnp.float32))
    # TODO(synk): cal_metrics / enrichment-factor ef_mean is host-side numpy
    # post-processing of netout/labels, not kernel compute; omitted.
    return loss[0, 0], netout, emb_pack[:, :EMBED_DIM], emb_pack[:, EMBED_DIM:]


if __name__ == "__main__":
    key = jax.random.PRNGKey(0)
    params = init_params(key)

    nodes_u = (jnp.arange(N_NODES, dtype=jnp.int32) % NUM_U).reshape(N_NODES, 1)
    nodes_v = ((jnp.arange(N_NODES, dtype=jnp.int32) * 2 + 1) % NUM_V).reshape(N_NODES, 1)

    # deterministic 0/1 label matrix with ones on the diagonal (the criterion
    # assumes the true pair is on the diagonal, as in the PyTorch reference)
    k_lab = jax.random.PRNGKey(1)
    labels = (jax.random.uniform(k_lab, (N_NODES, N_NODES)) > 0.7).astype(jnp.float32)
    labels = jnp.maximum(labels, jnp.eye(N_NODES, dtype=jnp.float32))

    # module.forward(...) path (embeddings only)
    embeds_u, embeds_v = hgnn_forward(params, nodes_u, nodes_v)
    # module.loss(...) path — fused; also returns the embeddings, so a training
    # step would reuse eu/ev from here rather than calling hgnn_forward again.
    loss, netout, eu, ev = hgnn_loss(params, nodes_u, nodes_v, labels)

    jax.block_until_ready((embeds_u, embeds_v, loss, netout, eu, ev))
    print("KERNEL_OK")
</pallas_src>

<mosaic_0001>
module attributes {stable_mosaic.version = 11 : i64} {
  func.func @_hgnn_fwd_kernel(%arg0: memref<8x1xi32, #tpu.memory_space<vmem>>, %arg1: memref<8x1xi32, #tpu.memory_space<vmem>>, %arg2: memref<32x32xf32, #tpu.memory_space<vmem>>, %arg3: memref<32x32xf32, #tpu.memory_space<vmem>>, %arg4: memref<32x64xf32, #tpu.memory_space<vmem>>, %arg5: memref<1x64xf32, #tpu.memory_space<vmem>>, %arg6: memref<8x64xf32, #tpu.memory_space<vmem>>) attributes {dimension_semantics = [], scalar_prefetch = 0 : i64, scratch_operands = 0 : i64, tpu.core_type = #tpu.core_type<tc>} {
    %c0 = arith.constant 0 : index
    %c0_0 = arith.constant 0 : index
    %0 = vector.load %arg0[%c0, %c0_0] : memref<8x1xi32, #tpu.memory_space<vmem>>, vector<8x1xi32>
    %1 = tpu.iota {dimensions = array<i32: 1>} : vector<8x32xi32>
    %2 = vector.broadcast %0 : vector<8x1xi32> to vector<8x32xi32>
    %3 = arith.cmpi eq, %2, %1 : vector<8x32xi32>
    %4 = arith.extui %3 : vector<8x32xi1> to vector<8x32xi32>
    %5 = arith.sitofp %4 : vector<8x32xi32> to vector<8x32xf32>
    %c0_1 = arith.constant 0 : index
    %c0_2 = arith.constant 0 : index
    %6 = vector.load %arg1[%c0_1, %c0_2] : memref<8x1xi32, #tpu.memory_space<vmem>>, vector<8x1xi32>
    %7 = tpu.iota {dimensions = array<i32: 1>} : vector<8x32xi32>
    %8 = vector.broadcast %6 : vector<8x1xi32> to vector<8x32xi32>
    %9 = arith.cmpi eq, %8, %7 : vector<8x32xi32>
    %10 = arith.extui %9 : vector<8x32xi1> to vector<8x32xi32>
    %11 = arith.sitofp %10 : vector<8x32xi32> to vector<8x32xf32>
    %c0_3 = arith.constant 0 : index
    %c0_4 = arith.constant 0 : index
    %12 = vector.load %arg2[%c0_3, %c0_4] : memref<32x32xf32, #tpu.memory_space<vmem>>, vector<32x32xf32>
    %cst = arith.constant dense<0.000000e+00> : vector<8x32xf32>
    %13 = tpu.matmul %5, %12, %cst {dimension_numbers = #tpu.dot_dimension_numbers<[1], [0], [0], [1], [0, 0, 1, 1], [], []>} : vector<8x32xf32>, vector<32x32xf32>, vector<8x32xf32> -> vector<8x32xf32>
    %c0_5 = arith.constant 0 : index
    %c0_6 = arith.constant 0 : index
    %14 = vector.load %arg3[%c0_5, %c0_6] : memref<32x32xf32, #tpu.memory_space<vmem>>, vector<32x32xf32>
    %cst_7 = arith.constant dense<0.000000e+00> : vector<8x32xf32>
    %15 = tpu.matmul %11, %14, %cst_7 {dimension_numbers = #tpu.dot_dimension_numbers<[1], [0], [0], [1], [0, 0, 1, 1], [], []>} : vector<8x32xf32>, vector<32x32xf32>, vector<8x32xf32> -> vector<8x32xf32>
    %16 = tpu.concatenate %13, %15 in 0 : vector<8x32xf32>, vector<8x32xf32> -> vector<16x32xf32>
    %c0_8 = arith.constant 0 : index
    %c0_9 = arith.constant 0 : index
    %17 = vector.load %arg4[%c0_8, %c0_9] : memref<32x64xf32, #tpu.memory_space<vmem>>, vector<32x64xf32>
    %cst_10 = arith.constant dense<0.000000e+00> : vector<16x64xf32>
    %18 = tpu.matmul %16, %17, %cst_10 {dimension_numbers = #tpu.dot_dimension_numbers<[1], [0], [0], [1], [0, 0, 1, 1], [], []>} : vector<16x32xf32>, vector<32x64xf32>, vector<16x64xf32> -> vector<16x64xf32>
    %c0_11 = arith.constant 0 : index
    %c0_12 = arith.constant 0 : index
    %19 = vector.load %arg5[%c0_11, %c0_12] : memref<1x64xf32, #tpu.memory_space<vmem>>, vector<1x64xf32>
    %20 = vector.broadcast %19 : vector<1x64xf32> to vector<16x64xf32>
    %21 = arith.addf %18, %20 : vector<16x64xf32>
    %cst_13 = arith.constant 0.000000e+00 : f32
    %22 = vector.broadcast %cst_13 : f32 to vector<16x64xf32>
    %23 = arith.maximumf %21, %22 : vector<16x64xf32>
    %24 = vector.extract_strided_slice %23 {offsets = [0, 0], sizes = [8, 32], strides = [1, 1]} : vector<16x64xf32> to vector<8x32xf32>
    %25 = vector.extract_strided_slice %23 {offsets = [8, 32], sizes = [8, 32], strides = [1, 1]} : vector<16x64xf32> to vector<8x32xf32>
    %26 = tpu.concatenate %24, %25 in 1 : vector<8x32xf32>, vector<8x32xf32> -> vector<8x64xf32>
    %c0_14 = arith.constant 0 : index
    %c0_15 = arith.constant 0 : index
    %27 = vector.load %arg6[%c0_14, %c0_15] : memref<8x64xf32, #tpu.memory_space<vmem>>, vector<8x64xf32>
    tpu.vector_store %arg6[%c0_14, %c0_15], %26 {strides = array<i32>} : memref<8x64xf32, #tpu.memory_space<vmem>>, vector<8x64xf32>,
    return
  }
}

</mosaic_0001>

<llo_original>
// kernel: tpu_custom_call.1
$region0: #{tpu_custom_call.1}
  #allocation0 [shape = 'u32[]', space=smem, size = 0x4, offset = 0x4, fixed_abs, tag = 'smem constant byte address 0x4 - core index']
  #allocation1 [shape = 'u32[144,128]{1,0:T(1,128)}', space=vmem, size = 0x12000, scoped, tag = 'internal scratch']
  %s0 = inlined_call_operand.vmem [shape: s32[8,1], index: 0, kind: input, shape index: {}]
  %s1 = inlined_call_operand.vmem [shape: s32[8,1], index: 1, kind: input, shape index: {}]
  %s2 = inlined_call_operand.hbm [shape: f32[32,32], index: 2, kind: input, shape index: {}]
  %s3 = inlined_call_operand.hbm [shape: f32[32,32], index: 3, kind: input, shape index: {}]
  %s4 = inlined_call_operand.vmem [shape: f32[32,64], index: 4, kind: input, shape index: {}]
  %s5 = inlined_call_operand.vmem [shape: f32[1,64], index: 5, kind: input, shape index: {}]
  %s6 = inlined_call_operand.hbm [shape: f32[8,64], index: 6, kind: output, shape index: {}]
  %s7 = sld [smem:[#allocation0]]
  $region42: #{tpu_custom_call.1} parent=0
    _
  %s9 = ssub.s32 1, %s7
  %s10 = scalar_select 0, %s9, %s7
  $region1: #{tpu_custom_call.1} parent=0
    #allocation2 [shape = 'u8[16384]{0}', space=vmem, size = 0x4000, scoped, tag = 'input window, operand 2, single buffered']
    #allocation3 [shape = 's32[1]{0}', space=sflag, size = 0x4, scoped, tag = 'scoped memory for tpu_custom_call.1']
    #allocation4 [shape = 's32[1]{0}', space=sflag, size = 0x4, scoped, tag = 'scoped memory for tpu_custom_call.1']
    #allocation5 [shape = 'u8[16384]{0}', space=vmem, size = 0x4000, scoped, tag = 'input window, operand 3, single buffered']
    #allocation6 [shape = 's32[1]{0}', space=sflag, size = 0x4, scoped, tag = 'scoped memory for tpu_custom_call.1']
    #allocation7 [shape = 'u8[4096]{0}', space=vmem, size = 0x1000, scoped, tag = 'output window, operand 0, single buffered']
    %11 = vsyncpa [#allocation3], 0
    %12 = vsyncpa [#allocation6], 0
    %13 = vsyncpa [#allocation4], 0
    // Predicated region
    $region2: #{tpu_custom_call.1} parent=1 // pred_check
      _
    $region3: #{tpu_custom_call.1} parent=1 // pred_check_branch
      %15 = sbr.rel (0) target = $region5
    $region4: #{tpu_custom_call.1} parent=1 // pred_region
      _
    $region5: #{tpu_custom_call.1} parent=1 // pred_fallthru
      _
    // Predicated region
    $region6: #{tpu_custom_call.1} parent=1 // pred_check
      _
    $region7: #{tpu_custom_call.1} parent=1 // pred_check_branch
      %17 = sbr.rel (0) target = $region9
    $region8: #{tpu_custom_call.1} parent=1 // pred_region
      _
    $region9: #{tpu_custom_call.1} parent=1 // pred_fallthru
      _
    // Predicated region
    $region10: #{tpu_custom_call.1} parent=1 // pred_check
      _
    $region11: #{tpu_custom_call.1} parent=1 // pred_check_branch
      %19 = sbr.rel (0) target = $region13
    $region12: #{tpu_custom_call.1} parent=1 // pred_region
      %s21 = ssub.s32 512, 512
      %22 = vsyncadd [#allocation3], %s21
      %s23 = sshll.u32 [#allocation2], 4
      %s24 = int_to_ptr.vmem [resolvable:$true] %s23
      %29 = dma.hbm_to_vmem [thread:$0]  %s2, 512, %s24, [#allocation3], 128, 128, 8
    $region13: #{tpu_custom_call.1} parent=1 // pred_fallthru
      _
    // Predicated region
    $region14: #{tpu_custom_call.1} parent=1 // pred_check
      _
    $region15: #{tpu_custom_call.1} parent=1 // pred_check_branch
      %31 = sbr.rel (0) target = $region17
    $region16: #{tpu_custom_call.1} parent=1 // pred_region
      %s33 = ssub.s32 512, 512
      %34 = vsyncadd [#allocation6], %s33
      %s35 = sshll.u32 [#allocation5], 4
      %s36 = int_to_ptr.vmem [resolvable:$true] %s35
      %41 = dma.hbm_to_vmem [thread:$0]  %s3, 512, %s36, [#allocation6], 128, 128, 8
    $region17: #{tpu_custom_call.1} parent=1 // pred_fallthru
      _
    // Predicated region
    $region18: #{tpu_custom_call.1} parent=1 // pred_check
      _
    $region19: #{tpu_custom_call.1} parent=1 // pred_check_branch
      %43 = sbr.rel (0) target = $region21
    $region20: #{tpu_custom_call.1} parent=1 // pred_region
      _
    $region21: #{tpu_custom_call.1} parent=1 // pred_fallthru
      _
    // Predicated region
    $region22: #{tpu_custom_call.1} parent=1 // pred_check
      _
    $region23: #{tpu_custom_call.1} parent=1 // pred_check_branch
      %45 = sbr.rel (0) target = $region25
    $region24: #{tpu_custom_call.1} parent=1 // pred_region
      _
    $region25: #{tpu_custom_call.1} parent=1 // pred_fallthru
      _
    // Predicated region
    $region26: #{tpu_custom_call.1} parent=1 // pred_check
      _
    $region27: #{tpu_custom_call.1} parent=1 // pred_check_branch
      %47 = sbr.rel (0) target = $region29
    $region28: #{tpu_custom_call.1} parent=1 // pred_region
      %48 = dma.done [#allocation3], 512
    $region29: #{tpu_custom_call.1} parent=1 // pred_fallthru
      _
    // Predicated region
    $region30: #{tpu_custom_call.1} parent=1 // pred_check
      _
    $region31: #{tpu_custom_call.1} parent=1 // pred_check_branch
      %50 = sbr.rel (0) target = $region33
    $region32: #{tpu_custom_call.1} parent=1 // pred_region
      %51 = dma.done [#allocation6], 512
    $region33: #{tpu_custom_call.1} parent=1 // pred_fallthru
      _
    %v52 = vld [vmem:[%s0] sm:$0xff]
    %v53 = vlaneseq
    %v54 = vand.u32 %v53, 127
    %55 = vset.pattern.permute.xlu0 0
    %56 = vperm.xlu0 %55, %v52
    %v57 = vpop.permute.xlu0 %56
    %vm58 = vcmp.eq.s32.totalorder %v57, %v54
    %v59 = vsel %vm58, 1, 0
    %v60 = vcvt.s32.f32 %v59
    %v61 = vld [vmem:[%s1] sm:$0xff]
    %62 = vset.pattern.permute.xlu0 0
    %63 = vperm.xlu0 %62, %v61
    %v64 = vpop.permute.xlu0 %63
    %vm65 = vcmp.eq.s32.totalorder %v64, %v54
    %v66 = vsel %vm65, 1, 0
    %v67 = vcvt.s32.f32 %v66
    %v68 = vld [vmem:[#allocation2] sm:$0xff]
    %v69 = vld [vmem:[#allocation2 + $0x8] sm:$0xff]
    %v70 = vld [vmem:[#allocation2 + $0x10] sm:$0xff]
    %v71 = vld [vmem:[#allocation2 + $0x18] sm:$0xff]
    %vm72 = vcmask 261120
    %v74 = vsel %vm72, %v60, 0
    %76 = vmatprep.subr.mxu0 0.0
    %77 = vmatpush1.msra.mxu0 %v68
    %78 = vmatprep.subr.mxu0 0.0
    %79 = vmatpush1.msra.mxu0 %v69
    %80 = vmatprep.subr.mxu0 0.0
    %81 = vmatpush1.msra.mxu0 %v70
    %82 = vmatprep.subr.mxu0 0.0
    %83 = vmatpush1.msra.mxu0 %v71
    %84 = vmatprep.subr.mxu0 0.0
    %85 = vmatpush1.msra.mxu0 0.0
    %86 = vmatprep.subr.mxu0 0.0
    %87 = vmatpush1.msra.mxu0 0.0
    %88 = vmatprep.subr.mxu0 0.0
    %89 = vmatpush1.msra.mxu0 0.0
    %90 = vmatprep.subr.mxu0 0.0
    %91 = vmatpush1.msra.mxu0 0.0
    %92 = vmatprep.subr.mxu0 0.0
    %93 = vmatpush1.msra.mxu0 0.0
    %94 = vmatprep.subr.mxu0 0.0
    %95 = vmatpush1.msra.mxu0 0.0
    %96 = vmatprep.subr.mxu0 0.0
    %97 = vmatpush1.msra.mxu0 0.0
    %98 = vmatprep.subr.mxu0 0.0
    %99 = vmatpush1.msra.mxu0 0.0
    %100 = vmatprep.subr.mxu0 0.0
    %101 = vmatpush1.msra.mxu0 0.0
    %102 = vmatprep.subr.mxu0 0.0
    %103 = vmatpush1.msra.mxu0 0.0
    %104 = vmatprep.subr.mxu0 0.0
    %105 = vmatpush1.msra.mxu0 0.0
    %106 = vmatprep.subr.mxu0 0.0
    %107 = vmatpush1.msra.mxu0 0.0
    %108 = vmatprep.subr.mxu0 0.0
    %109 = vmatpush1.msra.mxu0 0.0
    %110 = vmatprep.subr.mxu0 0.0
    %111 = vmatpush1.msra.mxu0 0.0
    %112 = vmatprep.subr.mxu0 0.0
    %113 = vmatpush1.msra.mxu0 0.0
    %114 = vmatprep.subr.mxu0 0.0
    %115 = vmatpush1.msra.mxu0 0.0
    %116 = vmatprep.subr.mxu0 0.0
    %117 = vmatpush1.msra.mxu0 0.0
    %118 = vmatprep.subr.mxu0 0.0
    %119 = vmatpush1.msra.mxu0 0.0
    %120 = vmatprep.subr.mxu0 0.0
    %121 = vmatpush1.msra.mxu0 0.0
    %122 = vmatprep.subr.mxu0 0.0
    %123 = vmatpush1.msra.mxu0 0.0
    %124 = vmatprep.subr.mxu0 0.0
    %125 = vmatpush1.msra.mxu0 0.0
    %126 = vmatprep.subr.mxu0 0.0
    %127 = vmatpush1.msra.mxu0 0.0
    %128 = vmatprep.subr.mxu0 0.0
    %129 = vmatpush1.msra.mxu0 0.0
    %130 = vmatprep.subr.mxu0 0.0
    %131 = vmatpush1.msra.mxu0 0.0
    %132 = vmatprep.subr.mxu0 0.0
    %133 = vmatpush1.msra.mxu0 0.0
    %134 = vmatprep.subr.mxu0 0.0
    %135 = vmatpush1.msra.mxu0 0.0
    %136 = vmatprep.subr.mxu0 0.0
    %137 = vmatpush1.msra.mxu0 0.0
    %138 = vmatprep.subr.mxu0 0.0
    %139 = vmatpush1.msra.mxu0 0.0
    %140 = vmatprep.mubr.f32.mxu0 0.0
    %141 = vmatmul.mubr.f32.gmra.mrb[0].mxu0 %v74
    %v142 = vpop.f32.mrb[0].mxu0
    %v143 = vadd.f32 0.0, %v142
    %v144 = vpop.f32.mrb[0].mxu0
    %145 = vdwg.mxu0
    %v146 = vld [vmem:[#allocation5] sm:$0xff]
    %v147 = vld [vmem:[#allocation5 + $0x8] sm:$0xff]
    %v148 = vld [vmem:[#allocation5 + $0x10] sm:$0xff]
    %v149 = vld [vmem:[#allocation5 + $0x18] sm:$0xff]
    %v151 = vsel %vm72, %v67, 0
    %153 = vmatprep.subr.mxu0 0.0
    %154 = vmatpush1.msra.mxu0 %v146
    %155 = vmatprep.subr.mxu0 0.0
    %156 = vmatpush1.msra.mxu0 %v147
    %157 = vmatprep.subr.mxu0 0.0
    %158 = vmatpush1.msra.mxu0 %v148
    %159 = vmatprep.subr.mxu0 0.0
    %160 = vmatpush1.msra.mxu0 %v149
    %161 = vmatprep.subr.mxu0 0.0
    %162 = vmatpush1.msra.mxu0 0.0
    %163 = vmatprep.subr.mxu0 0.0
    %164 = vmatpush1.msra.mxu0 0.0
    %165 = vmatprep.subr.mxu0 0.0
    %166 = vmatpush1.msra.mxu0 0.0
    %167 = vmatprep.subr.mxu0 0.0
    %168 = vmatpush1.msra.mxu0 0.0
    %169 = vmatprep.subr.mxu0 0.0
    %170 = vmatpush1.msra.mxu0 0.0
    %171 = vmatprep.subr.mxu0 0.0
    %172 = vmatpush1.msra.mxu0 0.0
    %173 = vmatprep.subr.mxu0 0.0
    %174 = vmatpush1.msra.mxu0 0.0
    %175 = vmatprep.subr.mxu0 0.0
    %176 = vmatpush1.msra.mxu0 0.0
    %177 = vmatprep.subr.mxu0 0.0
    %178 = vmatpush1.msra.mxu0 0.0
    %179 = vmatprep.subr.mxu0 0.0
    %180 = vmatpush1.msra.mxu0 0.0
    %181 = vmatprep.subr.mxu0 0.0
    %182 = vmatpush1.msra.mxu0 0.0
    %183 = vmatprep.subr.mxu0 0.0
    %184 = vmatpush1.msra.mxu0 0.0
    %185 = vmatprep.subr.mxu0 0.0
    %186 = vmatpush1.msra.mxu0 0.0
    %187 = vmatprep.subr.mxu0 0.0
    %188 = vmatpush1.msra.mxu0 0.0
    %189 = vmatprep.subr.mxu0 0.0
    %190 = vmatpush1.msra.mxu0 0.0
    %191 = vmatprep.subr.mxu0 0.0
    %192 = vmatpush1.msra.mxu0 0.0
    %193 = vmatprep.subr.mxu0 0.0
    %194 = vmatpush1.msra.mxu0 0.0
    %195 = vmatprep.subr.mxu0 0.0
    %196 = vmatpush1.msra.mxu0 0.0
    %197 = vmatprep.subr.mxu0 0.0
    %198 = vmatpush1.msra.mxu0 0.0
    %199 = vmatprep.subr.mxu0 0.0
    %200 = vmatpush1.msra.mxu0 0.0
    %201 = vmatprep.subr.mxu0 0.0
    %202 = vmatpush1.msra.mxu0 0.0
    %203 = vmatprep.subr.mxu0 0.0
    %204 = vmatpush1.msra.mxu0 0.0
    %205 = vmatprep.subr.mxu0 0.0
    %206 = vmatpush1.msra.mxu0 0.0
    %207 = vmatprep.subr.mxu0 0.0
    %208 = vmatpush1.msra.mxu0 0.0
    %209 = vmatprep.subr.mxu0 0.0
    %210 = vmatpush1.msra.mxu0 0.0
    %211 = vmatprep.subr.mxu0 0.0
    %212 = vmatpush1.msra.mxu0 0.0
    %213 = vmatprep.subr.mxu0 0.0
    %214 = vmatpush1.msra.mxu0 0.0
    %215 = vmatprep.subr.mxu0 0.0
    %216 = vmatpush1.msra.mxu0 0.0
    %217 = vmatprep.mubr.f32.mxu0 0.0
    %218 = vmatmul.mubr.f32.gmra.mrb[0].mxu0 %v151
    %v219 = vpop.f32.mrb[0].mxu0
    %v220 = vadd.f32 0.0, %v219
    %v221 = vpop.f32.mrb[0].mxu0
    %222 = vdwg.mxu0
    %v223 = vld [vmem:[%s4] sm:$0xff]
    %v224 = vld [vmem:[%s4 + $0x8] sm:$0xff]
    %v225 = vld [vmem:[%s4 + $0x10] sm:$0xff]
    %v226 = vld [vmem:[%s4 + $0x18] sm:$0xff]
    %v227 = vld [vmem:[%s5] sm:$0x1]
    %v229 = vlaneseq
    %v230 = vshrl.u32 %v229, 7
    %v231 = vsub.s32 0, %v230
    %v232 = vrot.slane %v227, %v231
    %v235 = vsel %vm72, %v143, 0
    %v238 = vsel %vm72, %v220, 0
    %240 = vmatprep.subr.mxu0 0.0
    %241 = vmatpush1.msra.mxu0 %v223
    %242 = vmatprep.subr.mxu0 0.0
    %243 = vmatpush1.msra.mxu0 %v224
    %244 = vmatprep.subr.mxu0 0.0
    %245 = vmatpush1.msra.mxu0 %v225
    %246 = vmatprep.subr.mxu0 0.0
    %247 = vmatpush1.msra.mxu0 %v226
    %248 = vmatprep.subr.mxu0 0.0
    %249 = vmatpush1.msra.mxu0 0.0
    %250 = vmatprep.subr.mxu0 0.0
    %251 = vmatpush1.msra.mxu0 0.0
    %252 = vmatprep.subr.mxu0 0.0
    %253 = vmatpush1.msra.mxu0 0.0
    %254 = vmatprep.subr.mxu0 0.0
    %255 = vmatpush1.msra.mxu0 0.0
    %256 = vmatprep.subr.mxu0 0.0
    %257 = vmatpush1.msra.mxu0 0.0
    %258 = vmatprep.subr.mxu0 0.0
    %259 = vmatpush1.msra.mxu0 0.0
    %260 = vmatprep.subr.mxu0 0.0
    %261 = vmatpush1.msra.mxu0 0.0
    %262 = vmatprep.subr.mxu0 0.0
    %263 = vmatpush1.msra.mxu0 0.0
    %264 = vmatprep.subr.mxu0 0.0
    %265 = vmatpush1.msra.mxu0 0.0
    %266 = vmatprep.subr.mxu0 0.0
    %267 = vmatpush1.msra.mxu0 0.0
    %268 = vmatprep.subr.mxu0 0.0
    %269 = vmatpush1.msra.mxu0 0.0
    %270 = vmatprep.subr.mxu0 0.0
    %271 = vmatpush1.msra.mxu0 0.0
    %272 = vmatprep.subr.mxu0 0.0
    %273 = vmatpush1.msra.mxu0 0.0
    %274 = vmatprep.subr.mxu0 0.0
    %275 = vmatpush1.msra.mxu0 0.0
    %276 = vmatprep.subr.mxu0 0.0
    %277 = vmatpush1.msra.mxu0 0.0
    %278 = vmatprep.subr.mxu0 0.0
    %279 = vmatpush1.msra.mxu0 0.0
    %280 = vmatprep.subr.mxu0 0.0
    %281 = vmatpush1.msra.mxu0 0.0
    %282 = vmatprep.subr.mxu0 0.0
    %283 = vmatpush1.msra.mxu0 0.0
    %284 = vmatprep.subr.mxu0 0.0
    %285 = vmatpush1.msra.mxu0 0.0
    %286 = vmatprep.subr.mxu0 0.0
    %287 = vmatpush1.msra.mxu0 0.0
    %288 = vmatprep.subr.mxu0 0.0
    %289 = vmatpush1.msra.mxu0 0.0
    %290 = vmatprep.subr.mxu0 0.0
    %291 = vmatpush1.msra.mxu0 0.0
    %292 = vmatprep.subr.mxu0 0.0
    %293 = vmatpush1.msra.mxu0 0.0
    %294 = vmatprep.subr.mxu0 0.0
    %295 = vmatpush1.msra.mxu0 0.0
    %296 = vmatprep.subr.mxu0 0.0
    %297 = vmatpush1.msra.mxu0 0.0
    %298 = vmatprep.subr.mxu0 0.0
    %299 = vmatpush1.msra.mxu0 0.0
    %300 = vmatprep.subr.mxu0 0.0
    %301 = vmatpush1.msra.mxu0 0.0
    %302 = vmatprep.subr.mxu0 0.0
    %303 = vmatpush1.msra.mxu0 0.0
    %304 = vmatprep.mubr.f32.mxu0 0.0
    %305 = vmatmul.mubr.f32.gmra.mrb[0].mxu0 %v235
    %v306 = vpop.f32.mrb[0].mxu0
    %v307 = vadd.f32 %v232, %v306
    %v308 = vpop.f32.mrb[0].mxu0
    %309 = vmatprep.mubr.f32.mxu0 0.0
    %310 = vmatmul.mubr.f32.gmra.mrb[0].mxu0 %v238
    %v311 = vpop.f32.mrb[0].mxu0
    %v312 = vadd.f32 %v232, %v311
    %v313 = vpop.f32.mrb[0].mxu0
    %314 = vdwg.mxu0
    %v315 = vmax.f32 %v307, 0.0
    %v316 = vmax.f32 %v312, 0.0
    %v317 = vsel %vm72, %v315, %v316
    %vm318 = vcmask 523264
    %319 = vst.msk [vmem:[#allocation7] sm:$0xff] %vm318, %v317
    // Predicated region
    $region34: #{tpu_custom_call.1} parent=1 // pred_check
      _
    $region35: #{tpu_custom_call.1} parent=1 // pred_check_branch
      %321 = sbr.rel (0) target = $region37
    $region36: #{tpu_custom_call.1} parent=1 // pred_region
      %s323 = ssub.s32 128, 128
      %324 = vsyncadd [#allocation4], %s323
      %s326 = sshll.u32 [#allocation7], 4
      %s327 = int_to_ptr.vmem [resolvable:$true] %s326
      %329 = dma.vmem_to_hbm [thread:$0]  %s327, 128, %s6, [#allocation4]
    $region37: #{tpu_custom_call.1} parent=1 // pred_fallthru
      _
    // Predicated region
    $region38: #{tpu_custom_call.1} parent=1 // pred_check
      _
    $region39: #{tpu_custom_call.1} parent=1 // pred_check_branch
      %331 = sbr.rel (0) target = $region41
    $region40: #{tpu_custom_call.1} parent=1 // pred_region
      %332 = dma.done [#allocation4], 128
    $region41: #{tpu_custom_call.1} parent=1 // pred_fallthru
      _
    %333 = vsyncpa [#allocation3], 1
    %334 = vsyncpa [#allocation6], 1
    %335 = vsyncpa [#allocation4], 1

</llo_original>
